<compile_context>
chip_gen: v6e
topology: v6e:2x2x1
jax: 0.10.0
libtpu: 0.0.40
codegen_flags: <defaults>
</compile_context>

<pallas_src>
import jax
import jax.numpy as jnp
from jax.experimental import pallas as pl
from jax.experimental.pallas import tpu as pltpu


# ----------------------------------------------------------------------------
# Kernel A: folded sparse conv  y_T = W_fold @ gathered_T  (+ fused pool sums)
# ----------------------------------------------------------------------------
def _conv_pool_kernel(bids_ref, g_ref, w_ref, y_ref, ps_ref):
    # g_ref: (K3*Cin, TN) bf16 ; w_ref: (Cout, K3*Cin) bf16 ; bids_ref: (1, TN) int32
    y = jnp.dot(w_ref[...], g_ref[...], preferred_element_type=jnp.float32)  # (Cout, TN) f32
    y_ref[...] = y

    # Fused global-avg-pool partial sums: per-batch masked lane reductions (VPU + XLU).
    bids = bids_ref[...]                                   # (1, TN)
    nb = ps_ref.shape[2]                                   # static number of batches
    cols = []
    for b in range(nb):
        m = (bids == b).astype(jnp.float32)                # (1, TN)
        cols.append(jnp.sum(y * m, axis=1, keepdims=True))  # (Cout, 1)
    ps_ref[0] = jnp.concatenate(cols, axis=1)              # (Cout, nb)


def sparse_conv_pool(gathered_t, w_fold, bids_p, num_batches, tile_n):
    # gathered_t: (K3*Cin, n_pad) bf16 ; w_fold: (Cout, K3*Cin) bf16 ; bids_p: (1, n_pad) int32
    KC, n_pad = gathered_t.shape
    Cout = w_fold.shape[0]
    nt = n_pad // tile_n
    return pl.pallas_call(
        _conv_pool_kernel,
        out_shape=(
            jax.ShapeDtypeStruct((Cout, n_pad), jnp.float32),          # y_T (lane-dense)
            jax.ShapeDtypeStruct((nt, Cout, num_batches), jnp.float32),  # pool partial sums
        ),
        grid=(nt,),
        in_specs=[
            pl.BlockSpec((1, tile_n), lambda i: (0, i)),
            pl.BlockSpec((KC, tile_n), lambda i: (0, i)),
            pl.BlockSpec((Cout, KC), lambda i: (0, 0)),
        ],
        out_specs=(
            pl.BlockSpec((Cout, tile_n), lambda i: (0, i)),
            pl.BlockSpec((1, Cout, num_batches), lambda i: (i, 0, 0)),
        ),
        compiler_params=pltpu.CompilerParams(dimension_semantics=("parallel",)),
    )(bids_p, gathered_t, w_fold)


# ----------------------------------------------------------------------------
# Kernel B: merged cls 1x1 conv + hard gumbel + per-point channel blend
# ----------------------------------------------------------------------------
def _blend_kernel(avg_ref, wc_ref, g_ref, bids_ref, y_ref, x_ref, o_ref):
    # avg_ref: (C, B) ; wc_ref: (2C, C) = [W0^T; W1^T] ; g_ref: (2C, B) = [g0^T; g1^T]
    C = o_ref.shape[0]
    nb = avg_ref.shape[1]
    lc = jnp.dot(wc_ref[...], avg_ref[...],
                 preferred_element_type=jnp.float32) + g_ref[...]   # (2C, B)
    # hard gumbel-softmax over the 2-way axis, keep class 0 (argmax ties -> class 0)
    cls = (lc[:C, :] >= lc[C:, :]).astype(jnp.float32)              # (C, B)

    y = y_ref[...]                                                  # (C, TN) conv output
    bids = bids_ref[...]                                            # (1, TN)
    pcls = jnp.zeros_like(y)
    for b in range(nb):                                             # VPU select, no scatter matmul
        pcls = jnp.where(bids == b, cls[:, b:b + 1], pcls)

    x_mean = jnp.mean(x_ref[...], axis=0, keepdims=True)            # (1, TN) input mean over C
    o_ref[...] = pcls * y + (1.0 - pcls) * x_mean


def blend(avg_t, wc_t, g_t, bids_p, y_t, x_t, tile_n):
    C, n_pad = y_t.shape
    B = avg_t.shape[1]
    C2 = wc_t.shape[0]
    nt = n_pad // tile_n
    return pl.pallas_call(
        _blend_kernel,
        out_shape=jax.ShapeDtypeStruct((C, n_pad), jnp.float32),
        grid=(nt,),
        in_specs=[
            pl.BlockSpec((C, B), lambda i: (0, 0)),
            pl.BlockSpec((C2, C), lambda i: (0, 0)),
            pl.BlockSpec((C2, B), lambda i: (0, 0)),
            pl.BlockSpec((1, tile_n), lambda i: (0, i)),
            pl.BlockSpec((C, tile_n), lambda i: (0, i)),
            pl.BlockSpec((C, tile_n), lambda i: (0, i)),
        ],
        out_specs=pl.BlockSpec((C, tile_n), lambda i: (0, i)),
        compiler_params=pltpu.CompilerParams(dimension_semantics=("parallel",)),
    )(avg_t, wc_t, g_t, bids_p, y_t, x_t)


# ----------------------------------------------------------------------------
# Plain-JAX glue: kernel-map construction (integer coordinate matching),
# layout folding/transposition and padding.
# ----------------------------------------------------------------------------
def kernel_offsets(kernel_size):
    r = jnp.arange(kernel_size, dtype=jnp.int32) - (kernel_size // 2)
    ox, oy, oz = jnp.meshgrid(r, r, r, indexing="ij")
    return jnp.stack([ox.ravel(), oy.ravel(), oz.ravel()], axis=-1)     # (K^3, 3)


def build_kernel_map(coords, offsets):
    # For each kernel offset and output point, index of the matching input point
    # (sentinel N when no neighbor exists).
    N = coords.shape[0]
    cb = coords[:, 0]
    cx = coords[:, 1:]

    def per_offset(off):
        tgt = cx + off                                                  # (N, 3)
        eq = (cb[:, None] == cb[None, :]) & jnp.all(
            tgt[:, None, :] == cx[None, :, :], axis=-1)                 # (N, N)
        idx = jnp.argmax(eq, axis=1)
        valid = jnp.any(eq, axis=1)
        return jnp.where(valid, idx, N)

    return jax.vmap(per_offset)(offsets)                                # (K^3, N)


def dychan_conv_forward(coords, feats, conv_w, cls_w, gumbel, kernel_size, num_batches,
                        tile_n=512):
    """Forward pass of Dychan_conv.

    tile_n: point-tile size (multiple of 128). With the folded (216, TN) bf16 tile the VMEM
    footprint is tiny; ~4-8K rows is a good choice on v5e/v6e, ~2-4K on v7x (64 MiB VMEM).
    """
    N, Cin = feats.shape
    K3, _, Cout = conv_w.shape
    assert Cin == Cout, "module's reshape(B, 2, in_channels) requires out_channels == in_channels"
    assert K3 == kernel_size ** 3
    assert tile_n % 128 == 0

    # --- kernel map + neighbor gather (plain-JAX glue, see TODOs) ---
    offs = kernel_offsets(kernel_size)
    nbr = build_kernel_map(coords, offs)                                # (K3, N)
    feats_ext = jnp.concatenate(
        [feats, jnp.zeros((1, Cin), feats.dtype)], axis=0).astype(jnp.bfloat16)
    gathered = jnp.take(feats_ext, nbr, axis=0)                         # (K3, N, Cin) bf16
    # Fold K^3 into the contraction dim and go channels-major (lane-dense on N):
    gathered_t = gathered.transpose(0, 2, 1).reshape(K3 * Cin, N)       # (K3*Cin, N)
    w_fold = conv_w.reshape(K3 * Cin, Cout).T.astype(jnp.bfloat16)      # (Cout, K3*Cin)

    # --- pad the point axis to a multiple of the tile ---
    n_pad = pl.cdiv(N, tile_n) * tile_n
    pad = n_pad - N
    gathered_t = jnp.pad(gathered_t, ((0, 0), (0, pad)))
    bids = coords[:, 0].astype(jnp.int32)
    bids_p = jnp.pad(bids, (0, pad), constant_values=-1).reshape(1, n_pad)
    x_t = jnp.pad(feats.T, ((0, 0), (0, pad)))                          # (Cin, n_pad) f32

    # --- kernel A: folded sparse conv + fused global-avg-pool partial sums ---
    y_t, psums = sparse_conv_pool(gathered_t, w_fold, bids_p, num_batches, tile_n)

    # --- tiny host reduce: finish the global average pool ---
    cnt = jnp.maximum(
        jnp.sum((bids[None, :] == jnp.arange(num_batches, dtype=jnp.int32)[:, None])
                .astype(jnp.float32), axis=1), 1.0)                     # (B,)
    avg_t = jnp.sum(psums, axis=0) / cnt[None, :]                       # (Cout, B)

    # --- kernel B: merged cls conv + hard gumbel + per-point blend ---
    wc_t = jnp.concatenate([cls_w[:, :Cout].T, cls_w[:, Cout:].T], axis=0)   # (2C, C)
    g_t = jnp.concatenate([gumbel[0].T, gumbel[1].T], axis=0)                # (2C, B)
    newf_t = blend(avg_t, wc_t, g_t, bids_p, y_t, x_t, tile_n)               # (Cout, n_pad)

    new_f = newf_t[:, :N].T                                             # back to (N, C)
    # Output sparse tensor: same coordinates as conv output (stride=1 => input coords).
    return coords, new_f


if __name__ == "__main__":
    key = jax.random.PRNGKey(0)
    B, C, K = 2, 8, 3           # in_channels == out_channels == 8, kernel_size=3, stride=1, bias=False
    G = 5                       # 5x5x5 occupied grid per batch -> N = 250 points (pads to 256, 2 tiles)

    r = jnp.arange(G, dtype=jnp.int32)
    gx, gy, gz = jnp.meshgrid(r, r, r, indexing="ij")
    grid_c = jnp.stack([gx.ravel(), gy.ravel(), gz.ravel()], axis=-1)
    coords = jnp.concatenate(
        [jnp.concatenate(
            [jnp.full((grid_c.shape[0], 1), b, dtype=jnp.int32), grid_c], axis=1)
         for b in range(B)], axis=0)
    N = coords.shape[0]

    k1, k2, k3, k4 = jax.random.split(key, 4)
    feats = jax.random.normal(k1, (N, C), jnp.float32)                  # x.F
    conv_w = 0.1 * jax.random.normal(k2, (K ** 3, C, C), jnp.float32)   # conv kernel
    cls_w = 0.1 * jax.random.normal(k3, (C, 2 * C), jnp.float32)        # 1x1 cls kernel
    gumbel = jax.random.gumbel(k4, (2, B, C), jnp.float32)              # gumbel noise

    out_coords, out_feats = dychan_conv_forward(
        coords, feats, conv_w, cls_w, gumbel, K, B, tile_n=128)
    jax.block_until_ready(out_feats)
    assert out_feats.shape == (N, C)
    assert bool(jnp.all(jnp.isfinite(out_feats)))
    print("KERNEL_OK")
</pallas_src>

<mosaic_0001>
module attributes {stable_mosaic.version = 11 : i64} {
  func.func @_conv_pool_kernel(%arg0: i32, %arg1: memref<1x128xi32, #tpu.memory_space<vmem>>, %arg2: memref<216x128xbf16, #tpu.memory_space<vmem>>, %arg3: memref<8x216xbf16, #tpu.memory_space<vmem>>, %arg4: memref<8x128xf32, #tpu.memory_space<vmem>>, %arg5: memref<1x8x2xf32, #tpu.memory_space<vmem>>) attributes {dimension_semantics = [#tpu.dimension_semantics<parallel>], iteration_bounds = array<i64: 2>, scalar_prefetch = 0 : i64, scratch_operands = 0 : i64, tpu.core_type = #tpu.core_type<tc>, window_params = [{transform_indices = @transform_0, window_bounds = array<i64: 1, 128>}, {transform_indices = @transform_1, window_bounds = array<i64: 216, 128>}, {pipeline_mode = #tpu.pipeline_mode<synchronous>, transform_indices = @transform_2, window_bounds = array<i64: 8, 216>}, {transform_indices = @transform_3, window_bounds = array<i64: 8, 128>}, {transform_indices = @transform_4, window_bounds = array<i64: 1, 8, 2>}]} {
    %c0 = arith.constant 0 : index
    %c0_0 = arith.constant 0 : index
    %0 = vector.load %arg3[%c0, %c0_0] : memref<8x216xbf16, #tpu.memory_space<vmem>>, vector<8x216xbf16>
    %c0_1 = arith.constant 0 : index
    %c0_2 = arith.constant 0 : index
    %1 = vector.load %arg2[%c0_1, %c0_2] : memref<216x128xbf16, #tpu.memory_space<vmem>>, vector<216x128xbf16>
    %cst = arith.constant dense<0.000000e+00> : vector<8x128xf32>
    %2 = tpu.matmul %0, %1, %cst {dimension_numbers = #tpu.dot_dimension_numbers<[1], [0], [0], [1], [0, 0, 1, 1], [], []>} : vector<8x216xbf16>, vector<216x128xbf16>, vector<8x128xf32> -> vector<8x128xf32>
    %c0_3 = arith.constant 0 : index
    %c0_4 = arith.constant 0 : index
    %3 = vector.load %arg4[%c0_3, %c0_4] : memref<8x128xf32, #tpu.memory_space<vmem>>, vector<8x128xf32>
    tpu.vector_store %arg4[%c0_3, %c0_4], %2 {strides = array<i32>} : memref<8x128xf32, #tpu.memory_space<vmem>>, vector<8x128xf32>,
    %c0_5 = arith.constant 0 : index
    %c0_6 = arith.constant 0 : index
    %4 = vector.load %arg1[%c0_5, %c0_6] : memref<1x128xi32, #tpu.memory_space<vmem>>, vector<1x128xi32>
    %c0_i32 = arith.constant 0 : i32
    %5 = vector.broadcast %c0_i32 : i32 to vector<1x128xi32>
    %6 = arith.cmpi eq, %4, %5 : vector<1x128xi32>
    %7 = arith.extui %6 : vector<1x128xi1> to vector<1x128xi32>
    %8 = arith.sitofp %7 : vector<1x128xi32> to vector<1x128xf32>
    %9 = vector.broadcast %8 : vector<1x128xf32> to vector<8x128xf32>
    %10 = arith.mulf %2, %9 : vector<8x128xf32>
    %cst_7 = arith.constant dense<0.000000e+00> : vector<8xf32>
    %11 = vector.multi_reduction <add>, %10, %cst_7 [1] : vector<8x128xf32> to vector<8xf32>
    %12 = vector.shape_cast %11 : vector<8xf32> to vector<8x1xf32>
    %c1_i32 = arith.constant 1 : i32
    %13 = vector.broadcast %c1_i32 : i32 to vector<1x128xi32>
    %14 = arith.cmpi eq, %4, %13 : vector<1x128xi32>
    %15 = arith.extui %14 : vector<1x128xi1> to vector<1x128xi32>
    %16 = arith.sitofp %15 : vector<1x128xi32> to vector<1x128xf32>
    %17 = vector.broadcast %16 : vector<1x128xf32> to vector<8x128xf32>
    %18 = arith.mulf %2, %17 : vector<8x128xf32>
    %cst_8 = arith.constant dense<0.000000e+00> : vector<8xf32>
    %19 = vector.multi_reduction <add>, %18, %cst_8 [1] : vector<8x128xf32> to vector<8xf32>
    %20 = vector.shape_cast %19 : vector<8xf32> to vector<8x1xf32>
    %21 = tpu.concatenate %12, %20 in 1 : vector<8x1xf32>, vector<8x1xf32> -> vector<8x2xf32>
    %c0_9 = arith.constant 0 : index
    %c0_10 = arith.constant 0 : index
    %c0_11 = arith.constant 0 : index
    %22 = vector.load %arg5[%c0_9, %c0_10, %c0_11] : memref<1x8x2xf32, #tpu.memory_space<vmem>>, vector<1x8x2xf32>
    %23 = vector.shape_cast %22 : vector<1x8x2xf32> to vector<8x2xf32>
    %24 = vector.shape_cast %21 : vector<8x2xf32> to vector<1x8x2xf32>
    tpu.vector_store %arg5[%c0_9, %c0_10, %c0_11], %24 {strides = array<i32>} : memref<1x8x2xf32, #tpu.memory_space<vmem>>, vector<1x8x2xf32>,
    return
  }
  func.func @transform_0(%arg0: i32) -> (i32, i32) {
    %c0_i32 = arith.constant 0 : i32
    %c0_i32_0 = arith.constant 0 : i32
    return %c0_i32, %arg0 : i32, i32
  }
  func.func @transform_1(%arg0: i32) -> (i32, i32) {
    %c0_i32 = arith.constant 0 : i32
    %c0_i32_0 = arith.constant 0 : i32
    return %c0_i32, %arg0 : i32, i32
  }
  func.func @transform_2(%arg0: i32) -> (i32, i32) {
    %c0_i32 = arith.constant 0 : i32
    %c0_i32_0 = arith.constant 0 : i32
    %c0_i32_1 = arith.constant 0 : i32
    return %c0_i32, %c0_i32_0 : i32, i32
  }
  func.func @transform_3(%arg0: i32) -> (i32, i32) {
    %c0_i32 = arith.constant 0 : i32
    %c0_i32_0 = arith.constant 0 : i32
    return %c0_i32, %arg0 : i32, i32
  }
  func.func @transform_4(%arg0: i32) -> (i32, i32, i32) {
    %c0_i32 = arith.constant 0 : i32
    %c0_i32_0 = arith.constant 0 : i32
    %c0_i32_1 = arith.constant 0 : i32
    return %arg0, %c0_i32, %c0_i32_0 : i32, i32, i32
  }
}

</mosaic_0001>

<llo_original>
// kernel: tpu_custom_call.1
$region0: #{tpu_custom_call.1}
  #allocation0 [shape = 'u32[]', space=smem, size = 0x4, offset = 0x4, fixed_abs, tag = 'smem constant byte address 0x4 - core index']
  #allocation1 [shape = 'u32[144,128]{1,0:T(1,128)}', space=vmem, size = 0x12000, scoped, tag = 'internal scratch']
  %s0 = inlined_call_operand.hbm [shape: s32[1,256], index: 0, kind: input, shape index: {}]
  %s1 = inlined_call_operand.hbm [shape: bf16[216,256], index: 1, kind: input, shape index: {}]
  %s2 = inlined_call_operand.hbm [shape: bf16[8,216], index: 2, kind: input, shape index: {}]
  %s3 = inlined_call_operand.hbm [shape: f32[8,256], index: 3, kind: output, shape index: {0}]
  %s4 = inlined_call_operand.vmem [shape: f32[2,8,2], index: 4, kind: output, shape index: {1}]
  %5 = xla_tuple %s3, %s4
  %s6 = sld [smem:[#allocation0]]
  $region65: #{tpu_custom_call.1} parent=0
    _
  %s8 = ssub.s32 1, %s6
  %s9 = scalar_select 0, %s8, %s6
  $region1: #{tpu_custom_call.1} parent=0
    #allocation2 [shape = 'u8[1024]{0}', space=vmem, size = 0x400, scoped, tag = 'input window, operand 0']
    #allocation3 [shape = 's32[2]{0}', space=sflag, size = 0x8, scoped, tag = 'scoped memory for tpu_custom_call.1']
    #allocation4 [shape = 's32[2]{0}', space=sflag, size = 0x8, scoped, tag = 'scoped memory for tpu_custom_call.1']
    #allocation5 [shape = 'u8[110592]{0}', space=vmem, size = 0x1b000, scoped, tag = 'input window, operand 1']
    #allocation6 [shape = 's32[2]{0}', space=sflag, size = 0x8, scoped, tag = 'scoped memory for tpu_custom_call.1']
    #allocation7 [shape = 'u8[4096]{0}', space=vmem, size = 0x1000, scoped, tag = 'input window, operand 2, single buffered']
    #allocation8 [shape = 'u8[8192]{0}', space=vmem, size = 0x2000, scoped, tag = 'output window, operand 0']
    %10 = vsyncpa [#allocation3], 0
    %s11 = scalar_lea.sflag [#allocation3], 1
    %12 = vsyncpa %s11, 0
    %13 = vsyncpa [#allocation6], 0
    %s14 = scalar_lea.sflag [#allocation6], 1
    %15 = vsyncpa %s14, 0
    %16 = vsyncpa [#allocation4], 0
    %s17 = scalar_lea.sflag [#allocation4], 1
    %18 = vsyncpa %s17, 0
    loop: start=0, step=1, limit=4
    $region2: #{tpu_custom_call.1} parent=1 // loop_pre_header
      _
    $region3: #{tpu_custom_call.1} parent=1 // loop_header
      %s20 = sphi 0, %s24
      %p21 = scmp.ge.s32.totalorder %s20, 4
      %s30 = sphi 0, %s32
      %s33 = sphi 0, %s30
      %s34 = sphi 0, %s33
      %s50 = sphi 0, %s34
      %s56 = sphi 0, %s58
      %s59 = sphi 0, %s56
      %s60 = sphi 0, %s59
      %s76 = sphi 0, %s60
      %s80 = sphi 0, %s80
      %s82 = sphi 0, %s80
      %s83 = sphi 0, %s82
      %s97 = sphi 0, %s83
      %s103 = sphi 0, %s105
      %s106 = sphi 0, %s103
      %s107 = sphi 0, %s106
      %s123 = sphi 0, %s107
      %s129 = sphi 0, %s131
      %s132 = sphi 0, %s129
      %s133 = sphi 0, %s132
      %s149 = sphi 0, %s133
    $region4: #{tpu_custom_call.1} parent=1 // loop_header_branch
      %23 = sbr.rel (%p21) target = $region8
    $region5: #{tpu_custom_call.1} parent=1 // loop_body
      %s25 = ssub.s32 %s20, 1
      %s26 = ssub.s32 %s20, 2
      %s27 = sadd.s32 %s20, 1
      %s28 = ssub.s32 %s20, %s27
      %p29 = scmp.eq.s32.totalorder %s28, 0
      %s31 = sadd.s32 %s30, 1
      %s32 = scalar_select %p29, %s30, %s31
      %p35 = pneg %p29
      %p36 = scmp.eq.s32.totalorder %s20, 1
      %p37 = por %p35, %p36
      %p38 = scmp.ne.s32.totalorder %s30, %s33
      %p39 = scmp.eq.s32.totalorder %s20, 0
      %p40 = por %p38, %p39
      %p41 = scmp.ne.s32.totalorder %s30, %s33
      %p42 = scmp.eq.s32.totalorder %s25, 1
      %p43 = por %p41, %p42
      %p44 = scmp.ne.s32.totalorder %s33, %s34
      %p45 = scmp.eq.s32.totalorder %s25, 0
      %p46 = por %p44, %p45
      %p47 = scmp.ne.s32.totalorder %s33, %s34
      %p48 = scmp.eq.s32.totalorder %s26, 1
      %p49 = por %p47, %p48
      %p51 = scmp.ne.s32.totalorder %s34, %s50
      %p52 = scmp.eq.s32.totalorder %s26, 0
      %p53 = por %p51, %p52
      %s54 = ssub.s32 %s20, %s27
      %p55 = scmp.eq.s32.totalorder %s54, 0
      %s57 = sadd.s32 %s56, 1
      %s58 = scalar_select %p55, %s56, %s57
      %p61 = pneg %p55
      %p62 = scmp.eq.s32.totalorder %s20, 1
      %p63 = por %p61, %p62
      %p64 = scmp.ne.s32.totalorder %s56, %s59
      %p65 = scmp.eq.s32.totalorder %s20, 0
      %p66 = por %p64, %p65
      %p67 = scmp.ne.s32.totalorder %s56, %s59
      %p68 = scmp.eq.s32.totalorder %s25, 1
      %p69 = por %p67, %p68
      %p70 = scmp.ne.s32.totalorder %s59, %s60
      %p71 = scmp.eq.s32.totalorder %s25, 0
      %p72 = por %p70, %p71
      %p73 = scmp.ne.s32.totalorder %s59, %s60
      %p74 = scmp.eq.s32.totalorder %s26, 1
      %p75 = por %p73, %p74
      %p77 = scmp.ne.s32.totalorder %s60, %s76
      %p78 = scmp.eq.s32.totalorder %s26, 0
      %p79 = por %p77, %p78
      %s81 = sadd.s32 %s80, 1
      %p84 = scmp.eq.s32.totalorder %s20, 1
      %p85 = scmp.ne.s32.totalorder %s80, %s82
      %p86 = scmp.eq.s32.totalorder %s20, 0
      %p87 = por %p85, %p86
      %p88 = scmp.ne.s32.totalorder %s80, %s82
      %p89 = scmp.eq.s32.totalorder %s25, 1
      %p90 = por %p88, %p89
      %p91 = scmp.ne.s32.totalorder %s82, %s83
      %p92 = scmp.eq.s32.totalorder %s25, 0
      %p93 = por %p91, %p92
      %p94 = scmp.ne.s32.totalorder %s82, %s83
      %p95 = scmp.eq.s32.totalorder %s26, 1
      %p96 = por %p94, %p95
      %p98 = scmp.ne.s32.totalorder %s83, %s97
      %p99 = scmp.eq.s32.totalorder %s26, 0
      %p100 = por %p98, %p99
      %s101 = ssub.s32 %s20, %s27
      %p102 = scmp.eq.s32.totalorder %s101, 0
      %s104 = sadd.s32 %s103, 1
      %s105 = scalar_select %p102, %s103, %s104
      %p108 = pneg %p102
      %p109 = scmp.eq.s32.totalorder %s20, 1
      %p110 = por %p108, %p109
      %p111 = scmp.ne.s32.totalorder %s103, %s106
      %p112 = scmp.eq.s32.totalorder %s20, 0
      %p113 = por %p111, %p112
      %p114 = scmp.ne.s32.totalorder %s103, %s106
      %p115 = scmp.eq.s32.totalorder %s25, 1
      %p116 = por %p114, %p115
      %p117 = scmp.ne.s32.totalorder %s106, %s107
      %p118 = scmp.eq.s32.totalorder %s25, 0
      %p119 = por %p117, %p118
      %p120 = scmp.ne.s32.totalorder %s106, %s107
      %p121 = scmp.eq.s32.totalorder %s26, 1
      %p122 = por %p120, %p121
      %p124 = scmp.ne.s32.totalorder %s107, %s123
      %p125 = scmp.eq.s32.totalorder %s26, 0
      %p126 = por %p124, %p125
      %s127 = ssub.s32 %s20, %s27
      %p128 = scmp.eq.s32.totalorder %s127, 0
      %s130 = sadd.s32 %s129, 1
      %s131 = scalar_select %p128, %s129, %s130
      %p134 = pneg %p128
      %p135 = scmp.eq.s32.totalorder %s20, 1
      %p136 = por %p134, %p135
      %p137 = scmp.ne.s32.totalorder %s129, %s132
      %p138 = scmp.eq.s32.totalorder %s20, 0
      %p139 = por %p137, %p138
      %p140 = scmp.ne.s32.totalorder %s129, %s132
      %p141 = scmp.eq.s32.totalorder %s25, 1
      %p142 = por %p140, %p141
      %p143 = scmp.ne.s32.totalorder %s132, %s133
      %p144 = scmp.eq.s32.totalorder %s25, 0
      %p145 = por %p143, %p144
      %p146 = scmp.ne.s32.totalorder %s132, %s133
      %p147 = scmp.eq.s32.totalorder %s26, 1
      %p148 = por %p146, %p147
      %p150 = scmp.ne.s32.totalorder %s133, %s149
      %p151 = scmp.eq.s32.totalorder %s26, 0
      %p152 = por %p150, %p151
      %p153 = scmp.le.s32.totalorder 1, %s20
      %p154 = scmp.lt.s32.totalorder %s20, 3
      %p155 = pnand %p153, %p154
      %p156 = pneg %p155
      // Predicated region
      $region9: #{tpu_custom_call.1} parent=5 // pred_check
        _
      $region10: #{tpu_custom_call.1} parent=5 // pred_check_branch
        %158 = sbr.rel (%p155) target = $region12
      $region11: #{tpu_custom_call.1} parent=5 // pred_region
        %s159 = ssub.s32 %s20, 1
        // Predicated region
        $region13: #{tpu_custom_call.1} parent=11 // pred_check
          %p160 = pneg %p93
        $region14: #{tpu_custom_call.1} parent=11 // pred_check_branch
          %162 = sbr.rel (%p160) target = $region16
        $region15: #{tpu_custom_call.1} parent=11 // pred_region
          %s164 = ssub.s32 128, 128
          %165 = vsyncadd [#allocation6], %s164
          %s167 = sshll.u32 [#allocation7], 4
          %s168 = int_to_ptr.vmem [resolvable:$true] %s167
          %170 = dma.hbm_to_vmem [thread:$0]  %s2, 128, %s168, [#allocation6]
        $region16: #{tpu_custom_call.1} parent=11 // pred_fallthru
          _
      $region12: #{tpu_custom_call.1} parent=5 // pred_fallthru
        _
      %p171 = scmp.lt.s32.totalorder %s20, 2
      // Predicated region
      $region17: #{tpu_custom_call.1} parent=5 // pred_check
        %p172 = pneg %p171
      $region18: #{tpu_custom_call.1} parent=5 // pred_check_branch
        %174 = sbr.rel (%p172) target = $region20
      $region19: #{tpu_custom_call.1} parent=5 // pred_region
        // Predicated region
        $region21: #{tpu_custom_call.1} parent=19 // pred_check
          %p175 = pneg %p40
        $region22: #{tpu_custom_call.1} parent=19 // pred_check_branch
          %177 = sbr.rel (%p175) target = $region24
        $region23: #{tpu_custom_call.1} parent=19 // pred_region
          %s178 = sand.u32 %s30, 1
          %s179 = scalar_lea.sflag [#allocation3], %s178
          %s180 = sand.u32 %s30, 1
          %s181 = scalar_lea.vmem [#allocation2], %s180
          %s183 = ssub.s32 16, 16
          %184 = vsyncadd %s179, %s183
          %s185 = smul.addr %s20, 16
          %s186 = scalar_lea.hbm %s0, %s185
          %s188 = sshll.u32 %s181, 4
          %s189 = int_to_ptr.vmem [resolvable:$true] %s188
          %191 = dma.hbm_to_vmem [thread:$0]  %s186, 16, %s189, %s179
        $region24: #{tpu_custom_call.1} parent=19 // pred_fallthru
          _
        // Predicated region
        $region25: #{tpu_custom_call.1} parent=19 // pred_check
          %p192 = pneg %p66
        $region26: #{tpu_custom_call.1} parent=19 // pred_check_branch
          %194 = sbr.rel (%p192) target = $region28
        $region27: #{tpu_custom_call.1} parent=19 // pred_region
          %s195 = sand.u32 %s20, 1
          %s196 = scalar_lea.sflag [#allocation6], %s195
          %s197 = sand.u32 %s56, 1
          %s198 = smul.addr %s197, 108
          %s199 = scalar_lea.vmem [#allocation5], %s198
          %s201 = ssub.s32 1728, 1728
          %202 = vsyncadd %s196, %s201
          %s203 = smul.addr %s20, 64
          %s204 = scalar_lea.hbm %s1, %s203
          %s205 = sshll.u32 %s199, 4
          %s206 = int_to_ptr.vmem [resolvable:$true] %s205
          %211 = dma.hbm_to_vmem [thread:$0]  %s204, 1728, %s206, %s196, 128, 64, 4
        $region28: #{tpu_custom_call.1} parent=19 // pred_fallthru
          _
      $region20: #{tpu_custom_call.1} parent=5 // pred_fallthru
        _
      %p212 = scmp.le.s32.totalorder 1, %s20
      %p213 = scmp.lt.s32.totalorder %s20, 3
      %p214 = pnand %p212, %p213
      %p215 = pneg %p214
      // Predicated region
      $region29: #{tpu_custom_call.1} parent=5 // pred_check
        _
      $region30: #{tpu_custom_call.1} parent=5 // pred_check_branch
        %217 = sbr.rel (%p214) target = $region32
      $region31: #{tpu_custom_call.1} parent=5 // pred_region
        %s218 = ssub.s32 %s20, 1
        %s219 = sand.u32 %s33, 1
        %s220 = scalar_lea.sflag [#allocation3], %s219
        %s221 = sand.u32 %s33, 1
        %s222 = scalar_lea.vmem [#allocation2], %s221
        // Predicated region
        $region33: #{tpu_custom_call.1} parent=31 // pred_check
          %p223 = pneg %p46
        $region34: #{tpu_custom_call.1} parent=31 // pred_check_branch
          %225 = sbr.rel (%p223) target = $region36
        $region35: #{tpu_custom_call.1} parent=31 // pred_region
          %226 = dma.done %s220, 16
        $region36: #{tpu_custom_call.1} parent=31 // pred_fallthru
          _
        %s227 = sand.u32 %s25, 1
        %s228 = scalar_lea.sflag [#allocation6], %s227
        %s229 = sand.u32 %s59, 1
        %s230 = smul.addr %s229, 108
        %s231 = scalar_lea.vmem [#allocation5], %s230
        // Predicated region
        $region37: #{tpu_custom_call.1} parent=31 // pred_check
          %p232 = pneg %p72
        $region38: #{tpu_custom_call.1} parent=31 // pred_check_branch
          %234 = sbr.rel (%p232) target = $region40
        $region39: #{tpu_custom_call.1} parent=31 // pred_region
          %235 = dma.done %s228, 1728
        $region40: #{tpu_custom_call.1} parent=31 // pred_fallthru
          _
        // Predicated region
        $region41: #{tpu_custom_call.1} parent=31 // pred_check
          %p236 = pneg %p93
        $region42: #{tpu_custom_call.1} parent=31 // pred_check_branch
          %238 = sbr.rel (%p236) target = $region44
        $region43: #{tpu_custom_call.1} parent=31 // pred_region
          %239 = dma.done [#allocation6], 128
        $region44: #{tpu_custom_call.1} parent=31 // pred_fallthru
          _
        %s240 = sand.u32 %s33, 1
        %s241 = scalar_lea.sflag [#allocation3], %s240
        %s242 = sand.u32 %s33, 1
        %s243 = scalar_lea.vmem [#allocation2], %s242
        %p244 = pneg %p46
        %p245 = pneg %p43
        %s246 = sand.u32 %s25, 1
        %s247 = scalar_lea.sflag [#allocation6], %s246
        %s248 = sand.u32 %s59, 1
        %s249 = smul.addr %s248, 108
        %s250 = scalar_lea.vmem [#allocation5], %s249
        %p251 = pneg %p72
        %p252 = pneg %p69
        %p253 = pneg %p93
        %p254 = pneg %p90
        %p255 = pneg %p119
        %p256 = pneg %p116
        %s257 = sand.u32 %s106, 1
        %s258 = scalar_lea.sflag [#allocation4], %s257
        %s259 = sand.u32 %s106, 1
        %s260 = smul.addr %s259, 8
        %s261 = scalar_lea.vmem [#allocation8], %s260
        %p262 = pneg %p145
        %p263 = pneg %p142
        %p264 = scmp.lt.s32.totalorder %s25, 1
        %s265 = scalar_select %p264, %s25, 1
        %s266 = smul.addr %s265, 8
        %s267 = scalar_lea.vmem %s4, %s266
        %p268 = scmp.lt.s32.totalorder %s25, 1
        %s269 = scalar_select %p268, %s25, 1
        %s270 = smul.addr %s269, 8
        %s271 = scalar_lea.vmem %s4, %s270
        %v273 = vld [vmem:[#allocation7] sm:$0xff]
        %v274 = vld [vmem:[%s231] sm:$0xf]
        %v275 = vld [vmem:[%s231 + $0x4] sm:$0xf]
        %v276 = vld [vmem:[%s231 + $0x8] sm:$0xf]
        %v277 = vld [vmem:[%s231 + $0xc] sm:$0xf]
        %v278 = vld [vmem:[%s231 + $0x10] sm:$0xf]
        %v279 = vld [vmem:[%s231 + $0x14] sm:$0xf]
        %v280 = vld [vmem:[%s231 + $0x18] sm:$0xf]
        %v281 = vld [vmem:[%s231 + $0x1c] sm:$0xf]
        %v282 = vld [vmem:[%s231 + $0x20] sm:$0xf]
        %v283 = vld [vmem:[%s231 + $0x24] sm:$0xf]
        %v284 = vld [vmem:[%s231 + $0x28] sm:$0xf]
        %v285 = vld [vmem:[%s231 + $0x2c] sm:$0xf]
        %v286 = vld [vmem:[%s231 + $0x30] sm:$0xf]
        %v287 = vld [vmem:[%s231 + $0x34] sm:$0xf]
        %v288 = vld [vmem:[%s231 + $0x38] sm:$0xf]
        %v289 = vld [vmem:[%s231 + $0x3c] sm:$0xf]
        %v290 = vld [vmem:[%s231 + $0x40] sm:$0xf]
        %v291 = vld [vmem:[%s231 + $0x44] sm:$0xf]
        %v292 = vld [vmem:[%s231 + $0x48] sm:$0xf]
        %v293 = vld [vmem:[%s231 + $0x4c] sm:$0xf]
        %v294 = vld [vmem:[%s231 + $0x50] sm:$0xf]
        %v295 = vld [vmem:[%s231 + $0x54] sm:$0xf]
        %v296 = vld [vmem:[%s231 + $0x58] sm:$0xf]
        %v297 = vld [vmem:[%s231 + $0x5c] sm:$0xf]
        %v298 = vld [vmem:[%s231 + $0x60] sm:$0xf]
        %v299 = vld [vmem:[%s231 + $0x64] sm:$0xf]
        %v300 = vld [vmem:[%s231 + $0x68] sm:$0xf]
        %v302 = vunpack.c.l.b16 %v273
        %v303 = vunpack.c.h.b16 %v273
        %v304 = vpack.c.b16 %v302, %v302
        %v305 = vpack.c.b16 %v303, %v303
        %v334 = vunpack.c.l.b16 %v274
        %v335 = vunpack.c.l.b16 %v275
        %v336 = vunpack.c.l.b16 %v276
        %v337 = vunpack.c.l.b16 %v277
        %v338 = vunpack.c.l.b16 %v278
        %v339 = vunpack.c.l.b16 %v279
        %v340 = vunpack.c.l.b16 %v280
        %v341 = vunpack.c.l.b16 %v281
        %v342 = vunpack.c.l.b16 %v282
        %v343 = vunpack.c.l.b16 %v283
        %v344 = vunpack.c.l.b16 %v284
        %v345 = vunpack.c.l.b16 %v285
        %v346 = vunpack.c.l.b16 %v286
        %v347 = vunpack.c.l.b16 %v287
        %v348 = vunpack.c.l.b16 %v288
        %v349 = vunpack.c.l.b16 %v289
        %v350 = vunpack.c.l.b16 %v290
        %v351 = vunpack.c.l.b16 %v291
        %v352 = vunpack.c.l.b16 %v292
        %v353 = vunpack.c.l.b16 %v293
        %v354 = vunpack.c.l.b16 %v294
        %v355 = vunpack.c.l.b16 %v295
        %v356 = vunpack.c.l.b16 %v296
        %v357 = vunpack.c.l.b16 %v297
        %v358 = vunpack.c.l.b16 %v298
        %v359 = vunpack.c.l.b16 %v299
        %v360 = vunpack.c.l.b16 %v300
        %v361 = vpack.c.b16 %v335, %v334
        %v362 = vpack.c.b16 %v337, %v336
        %v363 = vpack.c.b16 %v339, %v338
        %v364 = vpack.c.b16 %v341, %v340
        %v365 = vpack.c.b16 %v343, %v342
        %v366 = vpack.c.b16 %v345, %v344
        %v367 = vpack.c.b16 %v347, %v346
        %v368 = vpack.c.b16 %v349, %v348
        %v369 = vpack.c.b16 %v351, %v350
        %v370 = vpack.c.b16 %v353, %v352
        %v371 = vpack.c.b16 %v355, %v354
        %v372 = vpack.c.b16 %v357, %v356
        %v373 = vpack.c.b16 %v359, %v358
        %v374 = vpack.c.b16 %v360, %v360
        %vm388 = vcmask 719872
        %v390 = vsel %vm388, %v305, 0
        %vm392 = vcmask 1043456
        %v394 = vsel %vm392, %v374, 0
        %396 = vmatprep.subr.bf16.mxu0 0
        %397 = vmatpush1.bf16.msra.mxu0 %v368
        %398 = vmatprep.subr.bf16.mxu0 0
        %399 = vmatpush1.bf16.msra.mxu0 %v367
        %400 = vmatprep.subr.bf16.mxu0 0
        %401 = vmatpush1.bf16.msra.mxu0 %v366
        %402 = vmatprep.subr.bf16.mxu0 0
        %403 = vmatpush1.bf16.msra.mxu0 %v365
        %404 = vmatprep.subr.bf16.mxu0 0
        %405 = vmatpush1.bf16.msra.mxu0 %v364
        %406 = vmatprep.subr.bf16.mxu0 0
        %407 = vmatpush1.bf16.msra.mxu0 %v363
        %408 = vmatprep.subr.bf16.mxu0 0
        %409 = vmatpush1.bf16.msra.mxu0 %v362
        %410 = vmatprep.subr.bf16.mxu0 0
        %411 = vmatpush1.bf16.msra.mxu0 %v361
        %412 = vmatprep.subr.bf16.mxu0 0
        %413 = vmatpush2.bf16.msra.mxu0 0
        %414 = vmatprep.subr.bf16.mxu0 0
        %415 = vmatpush2.bf16.msra.mxu0 0
        %416 = vmatprep.subr.bf16.mxu0 0
        %417 = vmatpush2.bf16.msra.mxu0 %v394
        %418 = vmatprep.subr.bf16.mxu0 0
        %419 = vmatpush2.bf16.msra.mxu0 %v373
        %420 = vmatprep.subr.bf16.mxu0 0
        %421 = vmatpush2.bf16.msra.mxu0 %v372
        %422 = vmatprep.subr.bf16.mxu0 0
        %423 = vmatpush2.bf16.msra.mxu0 %v371
        %424 = vmatprep.subr.bf16.mxu0 0
        %425 = vmatpush2.bf16.msra.mxu0 %v370
        %426 = vmatprep.subr.bf16.mxu0 0
        %427 = vmatpush2.bf16.msra.mxu0 %v369
        %428 = vmatprep.mubr.bf16.mxu0 %v390
        %429 = vmatmul.mubr.bf16.gmra.mxu0 %v304
        %v430 = vpop.f32.mrf.mxu0
        %v431 = vadd.f32 0.0, %v430
        %v432 = vpop.f32.mrf.mxu0
        %v433 = vpop.f32.mrf.mxu0
        %v434 = vpop.f32.mrf.mxu0
        %435 = vdwg.mxu0
        %436 = vst [vmem:[%s261] sm:$0xff] %v431
        %v437 = vld [vmem:[%s222] sm:$0x1]
        %vm438 = vcmp.eq.s32.totalorder %v437, 0
        %v439 = vsel %vm438, 1, 0
        %v440 = vcvt.s32.f32 %v439
        %v442 = vlaneseq
        %v443 = vshrl.u32 %v442, 7
        %v444 = vsub.s32 0, %v443
        %v445 = vrot.slane %v440, %v444
        %v447 = vmul.f32 %v431, %v445
        %448 = vadd.xlane.f32.xlu0 %v447
        %v449 = vpop.xlane.xlu0 %448
        %vm450 = vcmp.eq.s32.totalorder %v437, 1
        %v451 = vsel %vm450, 1, 0
        %v452 = vcvt.s32.f32 %v451
        %v454 = vlaneseq
        %v455 = vshrl.u32 %v454, 7
        %v456 = vsub.s32 0, %v455
        %v457 = vrot.slane %v452, %v456
        %v459 = vmul.f32 %v431, %v457
        %460 = vadd.xlane.f32.xlu0 %v459
        %v461 = vpop.xlane.xlu0 %460
        %vm462 = vcmask 7168
        %v463 = vsel %vm462, %v449, %v461
        %vm464 = vcmask 15360
        %465 = vst.msk [vmem:[%s271] sm:$0xff] %vm464, %v463
        %s466 = sand.u32 %s106, 1
        %s467 = scalar_lea.sflag [#allocation4], %s466
        %s468 = sand.u32 %s106, 1
        %s469 = smul.addr %s468, 8
        %s470 = scalar_lea.vmem [#allocation8], %s469
        %p471 = scmp.lt.s32.totalorder %s25, 1
        %s472 = scalar_select %p471, %s25, 1
        %s473 = smul.addr %s472, 8
        %s474 = scalar_lea.vmem %s4, %s473
        // Predicated region
        $region45: #{tpu_custom_call.1} parent=31 // pred_check
          %p475 = pneg %p116
        $region46: #{tpu_custom_call.1} parent=31 // pred_check_branch
          %477 = sbr.rel (%p475) target = $region48
        $region47: #{tpu_custom_call.1} parent=31 // pred_region
          %s479 = ssub.s32 128, 128
          %480 = vsyncadd %s467, %s479
          %s481 = smul.addr %s25, 128
          %s482 = scalar_lea.hbm %s3, %s481
          %s484 = sshll.u32 %s470, 4
          %s485 = int_to_ptr.vmem [resolvable:$true] %s484
          %487 = dma.vmem_to_hbm [thread:$0]  %s485, 128, %s482, %s467
        $region48: #{tpu_custom_call.1} parent=31 // pred_fallthru
          _
        // Predicated region
        $region49: #{tpu_custom_call.1} parent=31 // pred_check
          %p488 = pneg %p142
        $region50: #{tpu_custom_call.1} parent=31 // pred_check_branch
          %490 = sbr.rel (%p488) target = $region52
        $region51: #{tpu_custom_call.1} parent=31 // pred_region
          _
        $region52: #{tpu_custom_call.1} parent=31 // pred_fallthru
          _
      $region32: #{tpu_custom_call.1} parent=5 // pred_fallthru
        _
      %p491 = scmp.le.s32.totalorder 2, %s20
      // Predicated region
      $region53: #{tpu_custom_call.1} parent=5 // pred_check
        %p492 = pneg %p491
      $region54: #{tpu_custom_call.1} parent=5 // pred_check_branch
        %494 = sbr.rel (%p492) target = $region56
      $region55: #{tpu_custom_call.1} parent=5 // pred_region
        %s495 = ssub.s32 %s20, 2
        // Predicated region
        $region57: #{tpu_custom_call.1} parent=55 // pred_check
          %p496 = pneg %p122
        $region58: #{tpu_custom_call.1} parent=55 // pred_check_branch
          %498 = sbr.rel (%p496) target = $region60
        $region59: #{tpu_custom_call.1} parent=55 // pred_region
          %s499 = sand.u32 %s107, 1
          %s500 = scalar_lea.sflag [#allocation4], %s499
          %s501 = sand.u32 %s107, 1
          %s502 = smul.addr %s501, 8
          %s503 = scalar_lea.vmem [#allocation8], %s502
          %504 = dma.done %s500, 128
        $region60: #{tpu_custom_call.1} parent=55 // pred_fallthru
          _
        // Predicated region
        $region61: #{tpu_custom_call.1} parent=55 // pred_check
          %p505 = pneg %p148
        $region62: #{tpu_custom_call.1} parent=55 // pred_check_branch
          %507 = sbr.rel (%p505) target = $region64
        $region63: #{tpu_custom_call.1} parent=55 // pred_region
          %p508 = scmp.lt.s32.totalorder %s26, 1
          %s509 = scalar_select %p508, %s26, 1
          %s510 = smul.addr %s509, 8
          %s511 = scalar_lea.vmem %s4, %s510
        $region64: #{tpu_custom_call.1} parent=55 // pred_fallthru
          _
      $region56: #{tpu_custom_call.1} parent=5 // pred_fallthru
        _
    $region6: #{tpu_custom_call.1} parent=1 // loop_footer
      %s24 = sadd.s32 1, %s20
    $region7: #{tpu_custom_call.1} parent=1 // loop_footer_branch
      %19 = sbr.rel target = $region3
    $region8: #{tpu_custom_call.1} parent=1 // loop_exit
      _
    %512 = vsyncpa [#allocation3], 1
    %s513 = scalar_lea.sflag [#allocation3], 1
    %514 = vsyncpa %s513, 1
    %515 = vsyncpa [#allocation6], 1
    %s516 = scalar_lea.sflag [#allocation6], 1
    %517 = vsyncpa %s516, 1
    %518 = vsyncpa [#allocation4], 1
    %s519 = scalar_lea.sflag [#allocation4], 1
    %520 = vsyncpa %s519, 1

</llo_original>
